<compile_context>
chip_gen: v7x
topology: tpu7x:2x2x1
jax: 0.10.0
libtpu: 0.0.40
codegen_flags: <defaults>
</compile_context>

<pallas_src>
import jax
import jax.numpy as jnp
from jax.experimental import pallas as pl
from jax.experimental.pallas import tpu as pltpu


def _round_up(x, m):
    return ((x + m - 1) // m) * m


def _cdiv(a, b):
    return -(-a // b)


def _hw_plan():
    """Generation-aware VMEM / grid / EUP plan."""
    try:
        dk = jax.devices()[0].device_kind.lower()
    except Exception:
        dk = ""
    big_vmem = any(s in dk for s in ("v2", "v3", "v4", "v5", "v6"))  # 128 MiB VMEM parts
    no_bf16_eup = any(s in dk for s in ("v2", "v3", "v4", "v5"))
    if big_vmem:
        return {
            "live_budget": 44 * 1024 * 1024,
            "vmem_limit": 100 * 1024 * 1024,
            "dual_tc": False,
            "bf16_eup": not no_bf16_eup,
        }
    # v7x (and unknown future parts): assume 64 MiB VMEM, 2 TensorCores/chip.
    return {
        "live_budget": 20 * 1024 * 1024,
        "vmem_limit": 48 * 1024 * 1024,
        "dual_tc": True,
        "bf16_eup": True,
    }


def _make_kernel(masked, use_bf16_exp):
    def kernel(x_ref, diag_ref, *rest):
        if masked:
            mask_ref, out_ref = rest
        else:
            (out_ref,) = rest

        x = x_ref[...].astype(jnp.float32)            # (tm, n_cols)
        diag = diag_ref[...].astype(jnp.float32)      # (tm, 1)

        # ---- softmax along the item axis (lanes) ----
        m = jnp.max(x, axis=1, keepdims=True)         # (tm, 1)
        e = jnp.exp(x - m)                            # full-tile exp #1
        denom = jnp.sum(e, axis=1, keepdims=True)     # (tm, 1), >= 1
        inv_denom = pl.reciprocal(denom, approx=True)
        if masked:
            # zero padded rows: O(tm) work, no full-tile iota / compare / AND
            inv_denom = inv_denom * mask_ref[...].astype(jnp.float32)
        softmax = e * inv_denom

        # ---- sigmoid(x - diag), reusing the softmax exponentials:
        #      sigmoid(x - diag) = t / (1 + t),  t = exp(x - m) * exp(m - diag)
        # m >= diag on valid rows so row_scale >= 1; the 1e30 clamp prevents
        # inf -> 0*inf NaNs (affected terms carry ~0 softmax weight) and is
        # what makes an explicit column mask unnecessary.
        row_scale = jnp.minimum(jnp.exp(m - diag), 1e30)     # (tm, 1), tiny EUP
        t = e * row_scale
        sig_diff = t * pl.reciprocal(1.0 + t, approx=True)

        # ---- sigmoid(x^2) = 1 / (1 + exp(-x^2)); -x^2 <= 0 so no overflow ----
        neg_sq = -(x * x)
        if use_bf16_exp:
            # bf16 EUP runs ~2x f32 rate on v6e/v7x; error stays well inside
            # the softmax-weighted mean's tolerance.
            t2 = jnp.exp(neg_sq.astype(jnp.bfloat16)).astype(jnp.float32)
        else:
            t2 = jnp.exp(neg_sq)                      # full-tile exp #2
        sig_sq = pl.reciprocal(1.0 + t2, approx=True)

        term = softmax * (sig_diff + sig_sq)

        # ---- fully reduce this row block; emit a tiny lane-dense (8,128) slab
        col = jnp.sum(term, axis=0, keepdims=True)    # (1, n_cols) sublane reduce
        tot = jnp.sum(col, axis=1, keepdims=True)     # (1, 1) lane reduce
        out_ref[...] = jnp.broadcast_to(tot, (8, 128))

    return kernel


def top1_max_loss(logit, tm=None):
    """logit: (N, N) float array (any float dtype). Returns scalar f32 loss."""
    n, n2 = logit.shape
    assert n == n2, "TOP1_max expects a square logit matrix"
    itemsize = jnp.dtype(logit.dtype).itemsize
    plan = _hw_plan()

    n_cols = _round_up(n, 128)            # lane (item) axis pads only to 128

    # ---- row-tile choice (generation aware) ----
    if tm is None:
        # live set per row block: double-buffered input stripe + ~8 f32
        # full-tile temps (x, e, softmax, t, sig_diff, neg_sq, sig_sq, term)
        per_row = n_cols * (2 * itemsize + 8 * 4)
        tm = plan["live_budget"] // max(1, per_row)
        tm = max(128, min(1024, (tm // 128) * 128))
        tm = min(tm, _round_up(n, 128))
        if plan["dual_tc"] and _round_up(n, 128) >= 256:
            # keep >= 2 (even) row blocks so ("parallel",) shards across TCs
            nb = _cdiv(n, tm)
            if nb < 2 or nb % 2 == 1:
                nb = max(2, nb + (nb % 2))
                tm = max(128, _round_up(_cdiv(n, nb), 128))
    else:
        tm = max(8, _round_up(int(tm), 8))

    if tm >= n:
        tm = n_rows = _round_up(n, 8)     # single block: block == full row dim
    else:
        n_rows = _round_up(n, tm)
    num_blocks = n_rows // tm
    masked = n_rows != n                  # only padded ROWS need masking

    # ---- padding (pad value = most-negative finite: exp(pad - m) == 0) ----
    if n_rows != n or n_cols != n:
        pad_val = jnp.finfo(logit.dtype).min
        logit_p = jnp.full((n_rows, n_cols), pad_val, dtype=logit.dtype)
        logit_p = logit_p.at[:n, :n].set(logit)
    else:
        logit_p = logit

    # Diagonal as a tiny (n_rows, 1) side input (the former (tm, tm) diagonal
    # sub-block was redundant DMA of data already inside the row stripe).
    diag = jnp.diagonal(logit).reshape(n, 1)
    if n_rows != n:
        diag = jnp.concatenate(
            [diag, jnp.zeros((n_rows - n, 1), diag.dtype)], axis=0)

    kernel = _make_kernel(masked, plan["bf16_eup"])

    in_specs = [
        pl.BlockSpec((tm, n_cols), lambda i: (i, 0)),   # row stripe
        pl.BlockSpec((tm, 1), lambda i: (i, 0)),        # diagonal column
    ]
    args = [logit_p, diag]
    if masked:
        row_mask = (jnp.arange(n_rows) < n).astype(jnp.float32).reshape(n_rows, 1)
        in_specs.append(pl.BlockSpec((tm, 1), lambda i: (i, 0)))
        args.append(row_mask)

    partials = pl.pallas_call(
        kernel,
        out_shape=jax.ShapeDtypeStruct((num_blocks * 8, 128), jnp.float32),
        grid=(num_blocks,),
        in_specs=in_specs,
        out_specs=pl.BlockSpec((8, 128), lambda i: (i, 0)),
        compiler_params=pltpu.CompilerParams(
            dimension_semantics=("parallel",),   # row blocks are independent
            vmem_limit_bytes=plan["vmem_limit"],
        ),
    )(*args)

    # Row 0 / lane 0 of each (8, 128) slab holds that block's total.
    return jnp.sum(partials[0::8, 0]) / jnp.float32(n * n)


def _reference(logit):
    logit = logit.astype(jnp.float32)
    sm = jax.nn.softmax(logit, axis=1)
    diag = jnp.diag(logit).reshape(-1, 1)
    diff = -(diag - logit)
    return jnp.mean(sm * (jax.nn.sigmoid(diff) + jax.nn.sigmoid(logit ** 2)))


if __name__ == "__main__":
    key = jax.random.PRNGKey(0)
    k1, k2, k3 = jax.random.split(key, 3)
    # approx-reciprocal (EUP vrcp) + optional bf16-EUP exp headroom
    tol = dict(rtol=3e-3, atol=1e-6)

    # (1) aligned batch, default tiling (single row block on most parts)
    n1 = 256
    logit1 = jax.random.normal(k1, (n1, n1), dtype=jnp.float32)
    ref1 = _reference(logit1)
    got1 = top1_max_loss(logit1)
    jax.block_until_ready(got1)
    assert jnp.allclose(got1, ref1, **tol), (got1, ref1)

    # (2) aligned batch, forced two row blocks -> tiled / pipelined path
    got2 = top1_max_loss(logit1, tm=128)
    jax.block_until_ready(got2)
    assert jnp.allclose(got2, ref1, **tol), (got2, ref1)

    # (3) typical unaligned GRU4REC batch size -> padded rows + cols, 2 blocks
    n3 = 200
    logit3 = jax.random.normal(k2, (n3, n3), dtype=jnp.float32)
    ref3 = _reference(logit3)
    got3 = top1_max_loss(logit3, tm=128)
    jax.block_until_ready(got3)
    assert jnp.allclose(got3, ref3, **tol), (got3, ref3)

    # (4) native bf16 input (kernel casts per tile; no wrapper f32 round-trip)
    logit4 = jax.random.normal(k1, (n1, n1), dtype=jnp.bfloat16)
    ref4 = _reference(logit4)
    got4 = top1_max_loss(logit4, tm=128)
    jax.block_until_ready(got4)
    assert jnp.allclose(got4, ref4, **tol), (got4, ref4)

    # (5) small unaligned batch, auto tiling -> single padded block (rows to 8,
    #     columns to 128), masked path
    n5 = 100
    logit5 = jax.random.normal(k3, (n5, n5), dtype=jnp.float32)
    ref5 = _reference(logit5)
    got5 = top1_max_loss(logit5)
    jax.block_until_ready(got5)
    assert jnp.allclose(got5, ref5, **tol), (got5, ref5)

    print("KERNEL_OK")
</pallas_src>

<mosaic_0001>
module attributes {stable_mosaic.version = 11 : i64} {
  func.func @kernel(%arg0: i32, %arg1: memref<128x256xf32, #tpu.memory_space<vmem>>, %arg2: memref<128x1xf32, #tpu.memory_space<vmem>>, %arg3: memref<8x128xf32, #tpu.memory_space<vmem>>) attributes {dimension_semantics = [#tpu.dimension_semantics<parallel>], iteration_bounds = array<i64: 2>, scalar_prefetch = 0 : i64, scratch_operands = 0 : i64, tpu.core_type = #tpu.core_type<tc>, window_params = [{transform_indices = @transform_0, window_bounds = array<i64: 128, 256>}, {transform_indices = @transform_1, window_bounds = array<i64: 128, 1>}, {transform_indices = @transform_2, window_bounds = array<i64: 8, 128>}]} {
    %c0 = arith.constant 0 : index
    %c0_0 = arith.constant 0 : index
    %0 = vector.load %arg1[%c0, %c0_0] : memref<128x256xf32, #tpu.memory_space<vmem>>, vector<128x256xf32>
    %c0_1 = arith.constant 0 : index
    %c0_2 = arith.constant 0 : index
    %1 = vector.load %arg2[%c0_1, %c0_2] : memref<128x1xf32, #tpu.memory_space<vmem>>, vector<128x1xf32>
    %cst = arith.constant dense<0xFF800000> : vector<128xf32>
    %2 = vector.multi_reduction <maximumf>, %0, %cst [1] : vector<128x256xf32> to vector<128xf32>
    %3 = vector.shape_cast %2 : vector<128xf32> to vector<128x1xf32>
    %4 = vector.broadcast %3 : vector<128x1xf32> to vector<128x256xf32>
    %5 = arith.subf %0, %4 : vector<128x256xf32>
    %6 = math.exp %5 : vector<128x256xf32>
    %cst_3 = arith.constant dense<0.000000e+00> : vector<128xf32>
    %7 = vector.multi_reduction <add>, %6, %cst_3 [1] : vector<128x256xf32> to vector<128xf32>
    %8 = vector.shape_cast %7 : vector<128xf32> to vector<128x1xf32>
    %9 = tpu.reciprocal %8 {approx = true} : vector<128x1xf32> -> vector<128x1xf32>
    %10 = vector.broadcast %9 : vector<128x1xf32> to vector<128x256xf32>
    %11 = arith.mulf %6, %10 : vector<128x256xf32>
    %12 = arith.subf %3, %1 : vector<128x1xf32>
    %13 = math.exp %12 : vector<128x1xf32>
    %cst_4 = arith.constant 1.000000e+30 : f32
    %14 = vector.broadcast %cst_4 : f32 to vector<128x1xf32>
    %15 = arith.minimumf %13, %14 : vector<128x1xf32>
    %16 = vector.broadcast %15 : vector<128x1xf32> to vector<128x256xf32>
    %17 = arith.mulf %6, %16 : vector<128x256xf32>
    %cst_5 = arith.constant 1.000000e+00 : f32
    %18 = vector.broadcast %cst_5 : f32 to vector<128x256xf32>
    %19 = arith.addf %18, %17 : vector<128x256xf32>
    %20 = tpu.reciprocal %19 {approx = true} : vector<128x256xf32> -> vector<128x256xf32>
    %21 = arith.mulf %17, %20 : vector<128x256xf32>
    %22 = arith.mulf %0, %0 : vector<128x256xf32>
    %cst_6 = arith.constant 0.000000e+00 : f32
    %23 = vector.broadcast %cst_6 : f32 to vector<128x256xf32>
    %24 = arith.subf %23, %22 : vector<128x256xf32>
    %25 = arith.truncf %24 : vector<128x256xf32> to vector<128x256xbf16>
    %26 = math.exp %25 : vector<128x256xbf16>
    %27 = arith.extf %26 : vector<128x256xbf16> to vector<128x256xf32>
    %cst_7 = arith.constant 1.000000e+00 : f32
    %28 = vector.broadcast %cst_7 : f32 to vector<128x256xf32>
    %29 = arith.addf %28, %27 : vector<128x256xf32>
    %30 = tpu.reciprocal %29 {approx = true} : vector<128x256xf32> -> vector<128x256xf32>
    %31 = arith.addf %21, %30 : vector<128x256xf32>
    %32 = arith.mulf %11, %31 : vector<128x256xf32>
    %cst_8 = arith.constant dense<0.000000e+00> : vector<256xf32>
    %33 = vector.multi_reduction <add>, %32, %cst_8 [0] : vector<128x256xf32> to vector<256xf32>
    %34 = vector.shape_cast %33 : vector<256xf32> to vector<1x256xf32>
    %cst_9 = arith.constant dense<0.000000e+00> : vector<1xf32>
    %35 = vector.multi_reduction <add>, %34, %cst_9 [1] : vector<1x256xf32> to vector<1xf32>
    %36 = vector.shape_cast %35 : vector<1xf32> to vector<1x1xf32>
    %37 = vector.shape_cast %36 : vector<1x1xf32> to vector<1x1xf32>
    %38 = vector.broadcast %37 : vector<1x1xf32> to vector<8x128xf32>
    %c0_10 = arith.constant 0 : index
    %c0_11 = arith.constant 0 : index
    %39 = vector.load %arg3[%c0_10, %c0_11] : memref<8x128xf32, #tpu.memory_space<vmem>>, vector<8x128xf32>
    tpu.vector_store %arg3[%c0_10, %c0_11], %38 {strides = array<i32>} : memref<8x128xf32, #tpu.memory_space<vmem>>, vector<8x128xf32>,
    return
  }
  func.func @transform_0(%arg0: i32) -> (i32, i32) {
    %c0_i32 = arith.constant 0 : i32
    %c0_i32_0 = arith.constant 0 : i32
    return %arg0, %c0_i32 : i32, i32
  }
  func.func @transform_1(%arg0: i32) -> (i32, i32) {
    %c0_i32 = arith.constant 0 : i32
    %c0_i32_0 = arith.constant 0 : i32
    return %arg0, %c0_i32 : i32, i32
  }
  func.func @transform_2(%arg0: i32) -> (i32, i32) {
    %c0_i32 = arith.constant 0 : i32
    %c0_i32_0 = arith.constant 0 : i32
    return %arg0, %c0_i32 : i32, i32
  }
}

</mosaic_0001>

<llo_original>
// kernel: tpu_custom_call.1
$region0: #{tpu_custom_call.1}
  #allocation0 [shape = 'u32[]', space=smem, size = 0x4, offset = 0x4, fixed_abs, tag = 'smem constant byte address 0x4 - core index']
  #allocation1 [shape = 'u32[144,128]{1,0:T(1,128)}', space=vmem, size = 0x12000, scoped, tag = 'internal scratch']
  %s0 = inlined_call_operand.hbm [shape: f32[256,256], index: 0, kind: input, shape index: {}]
  %s1 = inlined_call_operand.vmem [shape: f32[256,1], index: 1, kind: input, shape index: {}]
  %s2 = inlined_call_operand.hbm [shape: f32[16,128], index: 2, kind: output, shape index: {}]
  %s3 = sld [smem:[#allocation0]]
  $region45: #{tpu_custom_call.1} parent=0
    _
  %s5 = ssub.s32 1, %s3
  %s6 = scalar_select 0, %s5, %s3
  $region1: #{tpu_custom_call.1} parent=0
    #allocation2 [shape = 'u8[262144]{0}', space=vmem, size = 0x40000, scoped, tag = 'input window, operand 0']
    #allocation3 [shape = 's32[2]{0}', space=sflag, size = 0x8, scoped, tag = 'scoped memory for tpu_custom_call.1']
    #allocation4 [shape = 's32[2]{0}', space=sflag, size = 0x8, scoped, tag = 'scoped memory for tpu_custom_call.1']
    #allocation5 [shape = 'u8[8192]{0}', space=vmem, size = 0x2000, scoped, tag = 'output window, operand 0']
    %7 = vsyncpa [#allocation3], 0
    %s8 = scalar_lea.sflag [#allocation3], 1
    %9 = vsyncpa %s8, 0
    %10 = vsyncpa [#allocation4], 0
    %s11 = scalar_lea.sflag [#allocation4], 1
    %12 = vsyncpa %s11, 0
    loop: start=0, step=1, limit=4
    $region2: #{tpu_custom_call.1} parent=1 // loop_pre_header
      _
    $region3: #{tpu_custom_call.1} parent=1 // loop_header
      %s14 = sphi 0, %s18
      %p15 = scmp.ge.s32.totalorder %s14, 4
      %s24 = sphi 0, %s26
      %s27 = sphi 0, %s24
      %s28 = sphi 0, %s27
      %s44 = sphi 0, %s28
      %s50 = sphi 0, %s52
      %s53 = sphi 0, %s50
      %s54 = sphi 0, %s53
      %s70 = sphi 0, %s54
      %s76 = sphi 0, %s78
      %s79 = sphi 0, %s76
      %s80 = sphi 0, %s79
      %s96 = sphi 0, %s80
    $region4: #{tpu_custom_call.1} parent=1 // loop_header_branch
      %17 = sbr.rel (%p15) target = $region8
    $region5: #{tpu_custom_call.1} parent=1 // loop_body
      %s19 = ssub.s32 %s14, 1
      %s20 = ssub.s32 %s14, 2
      %s21 = sadd.s32 %s14, 1
      %s22 = ssub.s32 %s14, %s21
      %p23 = scmp.eq.s32.totalorder %s22, 0
      %s25 = sadd.s32 %s24, 1
      %s26 = scalar_select %p23, %s24, %s25
      %p29 = pneg %p23
      %p30 = scmp.eq.s32.totalorder %s14, 1
      %p31 = por %p29, %p30
      %p32 = scmp.ne.s32.totalorder %s24, %s27
      %p33 = scmp.eq.s32.totalorder %s14, 0
      %p34 = por %p32, %p33
      %p35 = scmp.ne.s32.totalorder %s24, %s27
      %p36 = scmp.eq.s32.totalorder %s19, 1
      %p37 = por %p35, %p36
      %p38 = scmp.ne.s32.totalorder %s27, %s28
      %p39 = scmp.eq.s32.totalorder %s19, 0
      %p40 = por %p38, %p39
      %p41 = scmp.ne.s32.totalorder %s27, %s28
      %p42 = scmp.eq.s32.totalorder %s20, 1
      %p43 = por %p41, %p42
      %p45 = scmp.ne.s32.totalorder %s28, %s44
      %p46 = scmp.eq.s32.totalorder %s20, 0
      %p47 = por %p45, %p46
      %s48 = ssub.s32 %s14, %s21
      %p49 = scmp.eq.s32.totalorder %s48, 0
      %s51 = sadd.s32 %s50, 1
      %s52 = scalar_select %p49, %s50, %s51
      %p55 = pneg %p49
      %p56 = scmp.eq.s32.totalorder %s14, 1
      %p57 = por %p55, %p56
      %p58 = scmp.ne.s32.totalorder %s50, %s53
      %p59 = scmp.eq.s32.totalorder %s14, 0
      %p60 = por %p58, %p59
      %p61 = scmp.ne.s32.totalorder %s50, %s53
      %p62 = scmp.eq.s32.totalorder %s19, 1
      %p63 = por %p61, %p62
      %p64 = scmp.ne.s32.totalorder %s53, %s54
      %p65 = scmp.eq.s32.totalorder %s19, 0
      %p66 = por %p64, %p65
      %p67 = scmp.ne.s32.totalorder %s53, %s54
      %p68 = scmp.eq.s32.totalorder %s20, 1
      %p69 = por %p67, %p68
      %p71 = scmp.ne.s32.totalorder %s54, %s70
      %p72 = scmp.eq.s32.totalorder %s20, 0
      %p73 = por %p71, %p72
      %s74 = ssub.s32 %s14, %s21
      %p75 = scmp.eq.s32.totalorder %s74, 0
      %s77 = sadd.s32 %s76, 1
      %s78 = scalar_select %p75, %s76, %s77
      %p81 = pneg %p75
      %p82 = scmp.eq.s32.totalorder %s14, 1
      %p83 = por %p81, %p82
      %p84 = scmp.ne.s32.totalorder %s76, %s79
      %p85 = scmp.eq.s32.totalorder %s14, 0
      %p86 = por %p84, %p85
      %p87 = scmp.ne.s32.totalorder %s76, %s79
      %p88 = scmp.eq.s32.totalorder %s19, 1
      %p89 = por %p87, %p88
      %p90 = scmp.ne.s32.totalorder %s79, %s80
      %p91 = scmp.eq.s32.totalorder %s19, 0
      %p92 = por %p90, %p91
      %p93 = scmp.ne.s32.totalorder %s79, %s80
      %p94 = scmp.eq.s32.totalorder %s20, 1
      %p95 = por %p93, %p94
      %p97 = scmp.ne.s32.totalorder %s80, %s96
      %p98 = scmp.eq.s32.totalorder %s20, 0
      %p99 = por %p97, %p98
      %p100 = scmp.le.s32.totalorder 1, %s14
      %p101 = scmp.lt.s32.totalorder %s14, 3
      %p102 = pnand %p100, %p101
      %p103 = pneg %p102
      // Predicated region
      $region9: #{tpu_custom_call.1} parent=5 // pred_check
        _
      $region10: #{tpu_custom_call.1} parent=5 // pred_check_branch
        %105 = sbr.rel (%p102) target = $region12
      $region11: #{tpu_custom_call.1} parent=5 // pred_region
        %s106 = ssub.s32 %s14, 1
      $region12: #{tpu_custom_call.1} parent=5 // pred_fallthru
        _
      %p107 = scmp.lt.s32.totalorder %s14, 2
      // Predicated region
      $region13: #{tpu_custom_call.1} parent=5 // pred_check
        %p108 = pneg %p107
      $region14: #{tpu_custom_call.1} parent=5 // pred_check_branch
        %110 = sbr.rel (%p108) target = $region16
      $region15: #{tpu_custom_call.1} parent=5 // pred_region
        // Predicated region
        $region17: #{tpu_custom_call.1} parent=15 // pred_check
          %p111 = pneg %p34
        $region18: #{tpu_custom_call.1} parent=15 // pred_check_branch
          %113 = sbr.rel (%p111) target = $region20
        $region19: #{tpu_custom_call.1} parent=15 // pred_region
          %s114 = sand.u32 %s24, 1
          %s115 = scalar_lea.sflag [#allocation3], %s114
          %s116 = sand.u32 %s24, 1
          %s117 = smul.addr %s116, 256
          %s118 = scalar_lea.vmem [#allocation2], %s117
          %s119 = smul.u32 16, %s14
          %s121 = ssub.s32 4096, 4096
          %122 = vsyncadd %s115, %s121
          %s123 = smul.addr %s119, 2
          %s124 = smul.addr %s123, 128
          %s125 = scalar_lea.hbm %s0, %s124
          %s126 = sshll.u32 %s118, 4
          %s127 = int_to_ptr.vmem [resolvable:$true] %s126
          %132 = dma.hbm_to_vmem [thread:$0]  %s125, 4096, %s127, %s115, 256, 256, 16
        $region20: #{tpu_custom_call.1} parent=15 // pred_fallthru
          _
        // Predicated region
        $region21: #{tpu_custom_call.1} parent=15 // pred_check
          %p133 = pneg %p60
        $region22: #{tpu_custom_call.1} parent=15 // pred_check_branch
          %135 = sbr.rel (%p133) target = $region24
        $region23: #{tpu_custom_call.1} parent=15 // pred_region
          %s136 = smul.u32 16, %s14
          %p137 = scmp.lt.s32.totalorder %s136, 31
          %s138 = scalar_select %p137, %s136, 31
          %s139 = smul.addr %s138, 8
          %s140 = scalar_lea.vmem %s1, %s139
          %s141 = smul.u32 16, %s14
        $region24: #{tpu_custom_call.1} parent=15 // pred_fallthru
          _
      $region16: #{tpu_custom_call.1} parent=5 // pred_fallthru
        _
      %p142 = scmp.le.s32.totalorder 1, %s14
      %p143 = scmp.lt.s32.totalorder %s14, 3
      %p144 = pnand %p142, %p143
      %p145 = pneg %p144
      // Predicated region
      $region25: #{tpu_custom_call.1} parent=5 // pred_check
        _
      $region26: #{tpu_custom_call.1} parent=5 // pred_check_branch
        %147 = sbr.rel (%p144) target = $region28
      $region27: #{tpu_custom_call.1} parent=5 // pred_region
        %s148 = ssub.s32 %s14, 1
        %s149 = sand.u32 %s27, 1
        %s150 = scalar_lea.sflag [#allocation3], %s149
        %s151 = sand.u32 %s27, 1
        %s152 = smul.addr %s151, 256
        %s153 = scalar_lea.vmem [#allocation2], %s152
        // Predicated region
        $region29: #{tpu_custom_call.1} parent=27 // pred_check
          %p154 = pneg %p40
        $region30: #{tpu_custom_call.1} parent=27 // pred_check_branch
          %156 = sbr.rel (%p154) target = $region32
        $region31: #{tpu_custom_call.1} parent=27 // pred_region
          %157 = dma.done %s150, 4096
        $region32: #{tpu_custom_call.1} parent=27 // pred_fallthru
          _
        %s158 = sand.u32 %s27, 1
        %s159 = scalar_lea.sflag [#allocation3], %s158
        %s160 = sand.u32 %s27, 1
        %s161 = smul.addr %s160, 256
        %s162 = scalar_lea.vmem [#allocation2], %s161
        %p163 = pneg %p40
        %p164 = pneg %p37
        %s165 = smul.u32 16, %s19
        %p166 = scmp.lt.s32.totalorder %s165, 31
        %s167 = scalar_select %p166, %s165, 31
        %s168 = smul.addr %s167, 8
        %s169 = scalar_lea.vmem %s1, %s168
        %p170 = pneg %p66
        %p171 = pneg %p63
        %p172 = pneg %p92
        %p173 = pneg %p89
        %s174 = sand.u32 %s79, 1
        %s175 = scalar_lea.sflag [#allocation4], %s174
        %s176 = sand.u32 %s79, 1
        %s177 = smul.addr %s176, 8
        %s178 = scalar_lea.vmem [#allocation5], %s177
        %s179 = smul.u32 16, %s19
        %s180 = smul.u32 16, %s19
        %p181 = scmp.lt.s32.totalorder %s180, 31
        %s182 = scalar_select %p181, %s180, 31
        %s183 = smul.addr %s182, 8
        %s184 = scalar_lea.vmem %s1, %s183
        %s185 = smul.u32 16, %s19
        %v186 = vld [vmem:[%s153] sm:$0xff]
        %v187 = vld [vmem:[%s153 + $0x8] sm:$0xff]
        %v188 = vld [vmem:[%s153 + $0x10] sm:$0xff]
        %v189 = vld [vmem:[%s153 + $0x18] sm:$0xff]
        %v190 = vld [vmem:[%s153 + $0x20] sm:$0xff]
        %v191 = vld [vmem:[%s153 + $0x28] sm:$0xff]
        %v192 = vld [vmem:[%s153 + $0x30] sm:$0xff]
        %v193 = vld [vmem:[%s153 + $0x38] sm:$0xff]
        %v194 = vld [vmem:[%s153 + $0x40] sm:$0xff]
        %v195 = vld [vmem:[%s153 + $0x48] sm:$0xff]
        %v196 = vld [vmem:[%s153 + $0x50] sm:$0xff]
        %v197 = vld [vmem:[%s153 + $0x58] sm:$0xff]
        %v198 = vld [vmem:[%s153 + $0x60] sm:$0xff]
        %v199 = vld [vmem:[%s153 + $0x68] sm:$0xff]
        %v200 = vld [vmem:[%s153 + $0x70] sm:$0xff]
        %v201 = vld [vmem:[%s153 + $0x78] sm:$0xff]
        %v202 = vld [vmem:[%s153 + $0x80] sm:$0xff]
        %v203 = vld [vmem:[%s153 + $0x88] sm:$0xff]
        %v204 = vld [vmem:[%s153 + $0x90] sm:$0xff]
        %v205 = vld [vmem:[%s153 + $0x98] sm:$0xff]
        %v206 = vld [vmem:[%s153 + $0xa0] sm:$0xff]
        %v207 = vld [vmem:[%s153 + $0xa8] sm:$0xff]
        %v208 = vld [vmem:[%s153 + $0xb0] sm:$0xff]
        %v209 = vld [vmem:[%s153 + $0xb8] sm:$0xff]
        %v210 = vld [vmem:[%s153 + $0xc0] sm:$0xff]
        %v211 = vld [vmem:[%s153 + $0xc8] sm:$0xff]
        %v212 = vld [vmem:[%s153 + $0xd0] sm:$0xff]
        %v213 = vld [vmem:[%s153 + $0xd8] sm:$0xff]
        %v214 = vld [vmem:[%s153 + $0xe0] sm:$0xff]
        %v215 = vld [vmem:[%s153 + $0xe8] sm:$0xff]
        %v216 = vld [vmem:[%s153 + $0xf0] sm:$0xff]
        %v217 = vld [vmem:[%s153 + $0xf8] sm:$0xff]
        %v218 = vld [vmem:[%s184] sm:$0xff]
        %v219 = vld [vmem:[%s184 + $0x8] sm:$0xff]
        %v220 = vld [vmem:[%s184 + $0x10] sm:$0xff]
        %v221 = vld [vmem:[%s184 + $0x18] sm:$0xff]
        %v222 = vld [vmem:[%s184 + $0x20] sm:$0xff]
        %v223 = vld [vmem:[%s184 + $0x28] sm:$0xff]
        %v224 = vld [vmem:[%s184 + $0x30] sm:$0xff]
        %v225 = vld [vmem:[%s184 + $0x38] sm:$0xff]
        %v226 = vld [vmem:[%s184 + $0x40] sm:$0xff]
        %v227 = vld [vmem:[%s184 + $0x48] sm:$0xff]
        %v228 = vld [vmem:[%s184 + $0x50] sm:$0xff]
        %v229 = vld [vmem:[%s184 + $0x58] sm:$0xff]
        %v230 = vld [vmem:[%s184 + $0x60] sm:$0xff]
        %v231 = vld [vmem:[%s184 + $0x68] sm:$0xff]
        %v232 = vld [vmem:[%s184 + $0x70] sm:$0xff]
        %v233 = vld [vmem:[%s184 + $0x78] sm:$0xff]
        %v234 = vmax.f32 %v186, %v187
        %235 = vmax.xlane.f32.xlu0 %v234
        %v236 = vpop.xlane.xlu0 %235
        %v237 = vmax.f32 %v188, %v189
        %238 = vmax.xlane.f32.xlu0 %v237
        %v239 = vpop.xlane.xlu0 %238
        %v240 = vmax.f32 %v190, %v191
        %241 = vmax.xlane.f32.xlu0 %v240
        %v242 = vpop.xlane.xlu0 %241
        %v243 = vmax.f32 %v192, %v193
        %244 = vmax.xlane.f32.xlu0 %v243
        %v245 = vpop.xlane.xlu0 %244
        %v246 = vmax.f32 %v194, %v195
        %247 = vmax.xlane.f32.xlu0 %v246
        %v248 = vpop.xlane.xlu0 %247
        %v249 = vmax.f32 %v196, %v197
        %250 = vmax.xlane.f32.xlu0 %v249
        %v251 = vpop.xlane.xlu0 %250
        %v252 = vmax.f32 %v198, %v199
        %253 = vmax.xlane.f32.xlu0 %v252
        %v254 = vpop.xlane.xlu0 %253
        %v255 = vmax.f32 %v200, %v201
        %256 = vmax.xlane.f32.xlu0 %v255
        %v257 = vpop.xlane.xlu0 %256
        %v258 = vmax.f32 %v202, %v203
        %259 = vmax.xlane.f32.xlu0 %v258
        %v260 = vpop.xlane.xlu0 %259
        %v261 = vmax.f32 %v204, %v205
        %262 = vmax.xlane.f32.xlu0 %v261
        %v263 = vpop.xlane.xlu0 %262
        %v264 = vmax.f32 %v206, %v207
        %265 = vmax.xlane.f32.xlu0 %v264
        %v266 = vpop.xlane.xlu0 %265
        %v267 = vmax.f32 %v208, %v209
        %268 = vmax.xlane.f32.xlu0 %v267
        %v269 = vpop.xlane.xlu0 %268
        %v270 = vmax.f32 %v210, %v211
        %271 = vmax.xlane.f32.xlu0 %v270
        %v272 = vpop.xlane.xlu0 %271
        %v273 = vmax.f32 %v212, %v213
        %274 = vmax.xlane.f32.xlu0 %v273
        %v275 = vpop.xlane.xlu0 %274
        %v276 = vmax.f32 %v214, %v215
        %277 = vmax.xlane.f32.xlu0 %v276
        %v278 = vpop.xlane.xlu0 %277
        %v279 = vmax.f32 %v216, %v217
        %280 = vmax.xlane.f32.xlu0 %v279
        %v281 = vpop.xlane.xlu0 %280
        %v282 = vsub.f32 %v186, %v236
        %v283 = vsub.f32 %v187, %v236
        %v284 = vsub.f32 %v188, %v239
        %v285 = vsub.f32 %v189, %v239
        %v286 = vsub.f32 %v190, %v242
        %v287 = vsub.f32 %v191, %v242
        %v288 = vsub.f32 %v192, %v245
        %v289 = vsub.f32 %v193, %v245
        %v290 = vsub.f32 %v194, %v248
        %v291 = vsub.f32 %v195, %v248
        %v292 = vsub.f32 %v196, %v251
        %v293 = vsub.f32 %v197, %v251
        %v294 = vsub.f32 %v198, %v254
        %v295 = vsub.f32 %v199, %v254
        %v296 = vsub.f32 %v200, %v257
        %v297 = vsub.f32 %v201, %v257
        %v298 = vsub.f32 %v202, %v260
        %v299 = vsub.f32 %v203, %v260
        %v300 = vsub.f32 %v204, %v263
        %v301 = vsub.f32 %v205, %v263
        %v302 = vsub.f32 %v206, %v266
        %v303 = vsub.f32 %v207, %v266
        %v304 = vsub.f32 %v208, %v269
        %v305 = vsub.f32 %v209, %v269
        %v306 = vsub.f32 %v210, %v272
        %v307 = vsub.f32 %v211, %v272
        %v308 = vsub.f32 %v212, %v275
        %v309 = vsub.f32 %v213, %v275
        %v310 = vsub.f32 %v214, %v278
        %v311 = vsub.f32 %v215, %v278
        %v312 = vsub.f32 %v216, %v281
        %v313 = vsub.f32 %v217, %v281
        %v314 = vmul.f32 %v282, 1.442695
        %v315 = vpow.pop %v314
        %v316 = vmul.f32 %v283, 1.442695
        %v317 = vpow.pop %v316
        %v318 = vmul.f32 %v284, 1.442695
        %v319 = vpow.pop %v318
        %v320 = vmul.f32 %v285, 1.442695
        %v321 = vpow.pop %v320
        %v322 = vmul.f32 %v286, 1.442695
        %v323 = vpow.pop %v322
        %v324 = vmul.f32 %v287, 1.442695
        %v325 = vpow.pop %v324
        %v326 = vmul.f32 %v288, 1.442695
        %v327 = vpow.pop %v326
        %v328 = vmul.f32 %v289, 1.442695
        %v329 = vpow.pop %v328
        %v330 = vmul.f32 %v290, 1.442695
        %v331 = vpow.pop %v330
        %v332 = vmul.f32 %v291, 1.442695
        %v333 = vpow.pop %v332
        %v334 = vmul.f32 %v292, 1.442695
        %v335 = vpow.pop %v334
        %v336 = vmul.f32 %v293, 1.442695
        %v337 = vpow.pop %v336
        %v338 = vmul.f32 %v294, 1.442695
        %v339 = vpow.pop %v338
        %v340 = vmul.f32 %v295, 1.442695
        %v341 = vpow.pop %v340
        %v342 = vmul.f32 %v296, 1.442695
        %v343 = vpow.pop %v342
        %v344 = vmul.f32 %v297, 1.442695
        %v345 = vpow.pop %v344
        %v346 = vmul.f32 %v298, 1.442695
        %v347 = vpow.pop %v346
        %v348 = vmul.f32 %v299, 1.442695
        %v349 = vpow.pop %v348
        %v350 = vmul.f32 %v300, 1.442695
        %v351 = vpow.pop %v350
        %v352 = vmul.f32 %v301, 1.442695
        %v353 = vpow.pop %v352
        %v354 = vmul.f32 %v302, 1.442695
        %v355 = vpow.pop %v354
        %v356 = vmul.f32 %v303, 1.442695
        %v357 = vpow.pop %v356
        %v358 = vmul.f32 %v304, 1.442695
        %v359 = vpow.pop %v358
        %v360 = vmul.f32 %v305, 1.442695
        %v361 = vpow.pop %v360
        %v362 = vmul.f32 %v306, 1.442695
        %v363 = vpow.pop %v362
        %v364 = vmul.f32 %v307, 1.442695
        %v365 = vpow.pop %v364
        %v366 = vmul.f32 %v308, 1.442695
        %v367 = vpow.pop %v366
        %v368 = vmul.f32 %v309, 1.442695
        %v369 = vpow.pop %v368
        %v370 = vmul.f32 %v310, 1.442695
        %v371 = vpow.pop %v370
        %v372 = vmul.f32 %v311, 1.442695
        %v373 = vpow.pop %v372
        %v374 = vmul.f32 %v312, 1.442695
        %v375 = vpow.pop %v374
        %v376 = vmul.f32 %v313, 1.442695
        %v377 = vpow.pop %v376
        %v378 = vadd.f32 %v315, %v317
        %379 = vadd.xlane.f32.xlu0 %v378
        %v380 = vpop.xlane.xlu0 %379
        %v381 = vadd.f32 %v319, %v321
        %382 = vadd.xlane.f32.xlu0 %v381
        %v383 = vpop.xlane.xlu0 %382
        %v384 = vadd.f32 %v323, %v325
        %385 = vadd.xlane.f32.xlu0 %v384
        %v386 = vpop.xlane.xlu0 %385
        %v387 = vadd.f32 %v327, %v329
        %388 = vadd.xlane.f32.xlu0 %v387
        %v389 = vpop.xlane.xlu0 %388
        %v390 = vadd.f32 %v331, %v333
        %391 = vadd.xlane.f32.xlu0 %v390
        %v392 = vpop.xlane.xlu0 %391
        %v393 = vadd.f32 %v335, %v337
        %394 = vadd.xlane.f32.xlu0 %v393
        %v395 = vpop.xlane.xlu0 %394
        %v396 = vadd.f32 %v339, %v341
        %397 = vadd.xlane.f32.xlu0 %v396
        %v398 = vpop.xlane.xlu0 %397
        %v399 = vadd.f32 %v343, %v345
        %400 = vadd.xlane.f32.xlu0 %v399
        %v401 = vpop.xlane.xlu0 %400
        %v402 = vadd.f32 %v347, %v349
        %403 = vadd.xlane.f32.xlu0 %v402
        %v404 = vpop.xlane.xlu0 %403
        %v405 = vadd.f32 %v351, %v353
        %406 = vadd.xlane.f32.xlu0 %v405
        %v407 = vpop.xlane.xlu0 %406
        %v408 = vadd.f32 %v355, %v357
        %409 = vadd.xlane.f32.xlu0 %v408
        %v410 = vpop.xlane.xlu0 %409
        %v411 = vadd.f32 %v359, %v361
        %412 = vadd.xlane.f32.xlu0 %v411
        %v413 = vpop.xlane.xlu0 %412
        %v414 = vadd.f32 %v363, %v365
        %415 = vadd.xlane.f32.xlu0 %v414
        %v416 = vpop.xlane.xlu0 %415
        %v417 = vadd.f32 %v367, %v369
        %418 = vadd.xlane.f32.xlu0 %v417
        %v419 = vpop.xlane.xlu0 %418
        %v420 = vadd.f32 %v371, %v373
        %421 = vadd.xlane.f32.xlu0 %v420
        %v422 = vpop.xlane.xlu0 %421
        %v423 = vadd.f32 %v375, %v377
        %424 = vadd.xlane.f32.xlu0 %v423
        %v425 = vpop.xlane.xlu0 %424
        %v426 = vrcp.pop %v380
        %v427 = vrcp.pop %v383
        %v428 = vrcp.pop %v386
        %v429 = vrcp.pop %v389
        %v430 = vrcp.pop %v392
        %v431 = vrcp.pop %v395
        %v432 = vrcp.pop %v398
        %v433 = vrcp.pop %v401
        %v434 = vrcp.pop %v404
        %v435 = vrcp.pop %v407
        %v436 = vrcp.pop %v410
        %v437 = vrcp.pop %v413
        %v438 = vrcp.pop %v416
        %v439 = vrcp.pop %v419
        %v440 = vrcp.pop %v422
        %v441 = vrcp.pop %v425
        %v442 = vmul.f32 %v315, %v426
        %v443 = vmul.f32 %v317, %v426
        %v444 = vmul.f32 %v319, %v427
        %v445 = vmul.f32 %v321, %v427
        %v446 = vmul.f32 %v323, %v428
        %v447 = vmul.f32 %v325, %v428
        %v448 = vmul.f32 %v327, %v429
        %v449 = vmul.f32 %v329, %v429
        %v450 = vmul.f32 %v331, %v430
        %v451 = vmul.f32 %v333, %v430
        %v452 = vmul.f32 %v335, %v431
        %v453 = vmul.f32 %v337, %v431
        %v454 = vmul.f32 %v339, %v432
        %v455 = vmul.f32 %v341, %v432
        %v456 = vmul.f32 %v343, %v433
        %v457 = vmul.f32 %v345, %v433
        %v458 = vmul.f32 %v347, %v434
        %v459 = vmul.f32 %v349, %v434
        %v460 = vmul.f32 %v351, %v435
        %v461 = vmul.f32 %v353, %v435
        %v462 = vmul.f32 %v355, %v436
        %v463 = vmul.f32 %v357, %v436
        %v464 = vmul.f32 %v359, %v437
        %v465 = vmul.f32 %v361, %v437
        %v466 = vmul.f32 %v363, %v438
        %v467 = vmul.f32 %v365, %v438
        %v468 = vmul.f32 %v367, %v439
        %v469 = vmul.f32 %v369, %v439
        %v470 = vmul.f32 %v371, %v440
        %v471 = vmul.f32 %v373, %v440
        %v472 = vmul.f32 %v375, %v441
        %v473 = vmul.f32 %v377, %v441
        %v474 = vsub.f32 %v236, %v218
        %v475 = vsub.f32 %v239, %v219
        %v476 = vsub.f32 %v242, %v220
        %v477 = vsub.f32 %v245, %v221
        %v478 = vsub.f32 %v248, %v222
        %v479 = vsub.f32 %v251, %v223
        %v480 = vsub.f32 %v254, %v224
        %v481 = vsub.f32 %v257, %v225
        %v482 = vsub.f32 %v260, %v226
        %v483 = vsub.f32 %v263, %v227
        %v484 = vsub.f32 %v266, %v228
        %v485 = vsub.f32 %v269, %v229
        %v486 = vsub.f32 %v272, %v230
        %v487 = vsub.f32 %v275, %v231
        %v488 = vsub.f32 %v278, %v232
        %v489 = vsub.f32 %v281, %v233
        %v490 = vmul.f32 %v474, 1.442695
        %v491 = vpow.pop %v490
        %v492 = vmul.f32 %v475, 1.442695
        %v493 = vpow.pop %v492
        %v494 = vmul.f32 %v476, 1.442695
        %v495 = vpow.pop %v494
        %v496 = vmul.f32 %v477, 1.442695
        %v497 = vpow.pop %v496
        %v498 = vmul.f32 %v478, 1.442695
        %v499 = vpow.pop %v498
        %v500 = vmul.f32 %v479, 1.442695
        %v501 = vpow.pop %v500
        %v502 = vmul.f32 %v480, 1.442695
        %v503 = vpow.pop %v502
        %v504 = vmul.f32 %v481, 1.442695
        %v505 = vpow.pop %v504
        %v506 = vmul.f32 %v482, 1.442695
        %v507 = vpow.pop %v506
        %v508 = vmul.f32 %v483, 1.442695
        %v509 = vpow.pop %v508
        %v510 = vmul.f32 %v484, 1.442695
        %v511 = vpow.pop %v510
        %v512 = vmul.f32 %v485, 1.442695
        %v513 = vpow.pop %v512
        %v514 = vmul.f32 %v486, 1.442695
        %v515 = vpow.pop %v514
        %v516 = vmul.f32 %v487, 1.442695
        %v517 = vpow.pop %v516
        %v518 = vmul.f32 %v488, 1.442695
        %v519 = vpow.pop %v518
        %v520 = vmul.f32 %v489, 1.442695
        %v521 = vpow.pop %v520
        %v522 = vmin.f32 %v491, 1e+30
        %v523 = vmin.f32 %v493, 1e+30
        %v524 = vmin.f32 %v495, 1e+30
        %v525 = vmin.f32 %v497, 1e+30
        %v526 = vmin.f32 %v499, 1e+30
        %v527 = vmin.f32 %v501, 1e+30
        %v528 = vmin.f32 %v503, 1e+30
        %v529 = vmin.f32 %v505, 1e+30
        %v530 = vmin.f32 %v507, 1e+30
        %v531 = vmin.f32 %v509, 1e+30
        %v532 = vmin.f32 %v511, 1e+30
        %v533 = vmin.f32 %v513, 1e+30
        %v534 = vmin.f32 %v515, 1e+30
        %v535 = vmin.f32 %v517, 1e+30
        %v536 = vmin.f32 %v519, 1e+30
        %v537 = vmin.f32 %v521, 1e+30
        %539 = vset.pattern.permute.xlu0 0
        %540 = vperm.xlu0 %539, %v522
        %v541 = vpop.permute.xlu0 %540
        %544 = vset.pattern.permute.xlu0 0
        %545 = vperm.xlu0 %544, %v523
        %v546 = vpop.permute.xlu0 %545
        %549 = vset.pattern.permute.xlu0 0
        %550 = vperm.xlu0 %549, %v524
        %v551 = vpop.permute.xlu0 %550
        %554 = vset.pattern.permute.xlu0 0
        %555 = vperm.xlu0 %554, %v525
        %v556 = vpop.permute.xlu0 %555
        %559 = vset.pattern.permute.xlu0 0
        %560 = vperm.xlu0 %559, %v526
        %v561 = vpop.permute.xlu0 %560
        %564 = vset.pattern.permute.xlu0 0
        %565 = vperm.xlu0 %564, %v527
        %v566 = vpop.permute.xlu0 %565
        %569 = vset.pattern.permute.xlu0 0
        %570 = vperm.xlu0 %569, %v528
        %v571 = vpop.permute.xlu0 %570
        %574 = vset.pattern.permute.xlu0 0
        %575 = vperm.xlu0 %574, %v529
        %v576 = vpop.permute.xlu0 %575
        %579 = vset.pattern.permute.xlu0 0
        %580 = vperm.xlu0 %579, %v530
        %v581 = vpop.permute.xlu0 %580
        %584 = vset.pattern.permute.xlu0 0
        %585 = vperm.xlu0 %584, %v531
        %v586 = vpop.permute.xlu0 %585
        %589 = vset.pattern.permute.xlu0 0
        %590 = vperm.xlu0 %589, %v532
        %v591 = vpop.permute.xlu0 %590
        %594 = vset.pattern.permute.xlu0 0
        %595 = vperm.xlu0 %594, %v533
        %v596 = vpop.permute.xlu0 %595
        %599 = vset.pattern.permute.xlu0 0
        %600 = vperm.xlu0 %599, %v534
        %v601 = vpop.permute.xlu0 %600
        %604 = vset.pattern.permute.xlu0 0
        %605 = vperm.xlu0 %604, %v535
        %v606 = vpop.permute.xlu0 %605
        %609 = vset.pattern.permute.xlu0 0
        %610 = vperm.xlu0 %609, %v536
        %v611 = vpop.permute.xlu0 %610
        %614 = vset.pattern.permute.xlu0 0
        %615 = vperm.xlu0 %614, %v537
        %v616 = vpop.permute.xlu0 %615
        %v618 = vmul.f32 %v315, %v541
        %v619 = vmul.f32 %v317, %v541
        %v620 = vmul.f32 %v319, %v546
        %v621 = vmul.f32 %v321, %v546
        %v622 = vmul.f32 %v323, %v551
        %v623 = vmul.f32 %v325, %v551
        %v624 = vmul.f32 %v327, %v556
        %v625 = vmul.f32 %v329, %v556
        %v626 = vmul.f32 %v331, %v561
        %v627 = vmul.f32 %v333, %v561
        %v628 = vmul.f32 %v335, %v566
        %v629 = vmul.f32 %v337, %v566
        %v630 = vmul.f32 %v339, %v571
        %v631 = vmul.f32 %v341, %v571
        %v632 = vmul.f32 %v343, %v576
        %v633 = vmul.f32 %v345, %v576
        %v634 = vmul.f32 %v347, %v581
        %v635 = vmul.f32 %v349, %v581
        %v636 = vmul.f32 %v351, %v586
        %v637 = vmul.f32 %v353, %v586
        %v638 = vmul.f32 %v355, %v591
        %v639 = vmul.f32 %v357, %v591
        %v640 = vmul.f32 %v359, %v596
        %v641 = vmul.f32 %v361, %v596
        %v642 = vmul.f32 %v363, %v601
        %v643 = vmul.f32 %v365, %v601
        %v644 = vmul.f32 %v367, %v606
        %v645 = vmul.f32 %v369, %v606
        %v646 = vmul.f32 %v371, %v611
        %v647 = vmul.f32 %v373, %v611
        %v648 = vmul.f32 %v375, %v616
        %v649 = vmul.f32 %v377, %v616
        %v650 = vadd.f32 %v618, 1.0
        %v651 = vadd.f32 %v619, 1.0
        %v652 = vadd.f32 %v620, 1.0
        %v653 = vadd.f32 %v621, 1.0
        %v654 = vadd.f32 %v622, 1.0
        %v655 = vadd.f32 %v623, 1.0
        %v656 = vadd.f32 %v624, 1.0
        %v657 = vadd.f32 %v625, 1.0
        %v658 = vadd.f32 %v626, 1.0
        %v659 = vadd.f32 %v627, 1.0
        %v660 = vadd.f32 %v628, 1.0
        %v661 = vadd.f32 %v629, 1.0
        %v662 = vadd.f32 %v630, 1.0
        %v663 = vadd.f32 %v631, 1.0
        %v664 = vadd.f32 %v632, 1.0
        %v665 = vadd.f32 %v633, 1.0
        %v666 = vadd.f32 %v634, 1.0
        %v667 = vadd.f32 %v635, 1.0
        %v668 = vadd.f32 %v636, 1.0
        %v669 = vadd.f32 %v637, 1.0
        %v670 = vadd.f32 %v638, 1.0
        %v671 = vadd.f32 %v639, 1.0
        %v672 = vadd.f32 %v640, 1.0
        %v673 = vadd.f32 %v641, 1.0
        %v674 = vadd.f32 %v642, 1.0
        %v675 = vadd.f32 %v643, 1.0
        %v676 = vadd.f32 %v644, 1.0
        %v677 = vadd.f32 %v645, 1.0
        %v678 = vadd.f32 %v646, 1.0
        %v679 = vadd.f32 %v647, 1.0
        %v680 = vadd.f32 %v648, 1.0
        %v681 = vadd.f32 %v649, 1.0
        %v682 = vrcp.pop %v650
        %v683 = vrcp.pop %v651
        %v684 = vrcp.pop %v652
        %v685 = vrcp.pop %v653
        %v686 = vrcp.pop %v654
        %v687 = vrcp.pop %v655
        %v688 = vrcp.pop %v656
        %v689 = vrcp.pop %v657
        %v690 = vrcp.pop %v658
        %v691 = vrcp.pop %v659
        %v692 = vrcp.pop %v660
        %v693 = vrcp.pop %v661
        %v694 = vrcp.pop %v662
        %v695 = vrcp.pop %v663
        %v696 = vrcp.pop %v664
        %v697 = vrcp.pop %v665
        %v698 = vrcp.pop %v666
        %v699 = vrcp.pop %v667
        %v700 = vrcp.pop %v668
        %v701 = vrcp.pop %v669
        %v702 = vrcp.pop %v670
        %v703 = vrcp.pop %v671
        %v704 = vrcp.pop %v672
        %v705 = vrcp.pop %v673
        %v706 = vrcp.pop %v674
        %v707 = vrcp.pop %v675
        %v708 = vrcp.pop %v676
        %v709 = vrcp.pop %v677
        %v710 = vrcp.pop %v678
        %v711 = vrcp.pop %v679
        %v712 = vrcp.pop %v680
        %v713 = vrcp.pop %v681
        %v714 = vmul.f32 %v618, %v682
        %v715 = vmul.f32 %v619, %v683
        %v716 = vmul.f32 %v620, %v684
        %v717 = vmul.f32 %v621, %v685
        %v718 = vmul.f32 %v622, %v686
        %v719 = vmul.f32 %v623, %v687
        %v720 = vmul.f32 %v624, %v688
        %v721 = vmul.f32 %v625, %v689
        %v722 = vmul.f32 %v626, %v690
        %v723 = vmul.f32 %v627, %v691
        %v724 = vmul.f32 %v628, %v692
        %v725 = vmul.f32 %v629, %v693
        %v726 = vmul.f32 %v630, %v694
        %v727 = vmul.f32 %v631, %v695
        %v728 = vmul.f32 %v632, %v696
        %v729 = vmul.f32 %v633, %v697
        %v730 = vmul.f32 %v634, %v698
        %v731 = vmul.f32 %v635, %v699
        %v732 = vmul.f32 %v636, %v700
        %v733 = vmul.f32 %v637, %v701
        %v734 = vmul.f32 %v638, %v702
        %v735 = vmul.f32 %v639, %v703
        %v736 = vmul.f32 %v640, %v704
        %v737 = vmul.f32 %v641, %v705
        %v738 = vmul.f32 %v642, %v706
        %v739 = vmul.f32 %v643, %v707
        %v740 = vmul.f32 %v644, %v708
        %v741 = vmul.f32 %v645, %v709
        %v742 = vmul.f32 %v646, %v710
        %v743 = vmul.f32 %v647, %v711
        %v744 = vmul.f32 %v648, %v712
        %v745 = vmul.f32 %v649, %v713
        %v746 = vmul.f32 %v186, %v186
        %v747 = vmul.f32 %v187, %v187
        %v748 = vmul.f32 %v188, %v188
        %v749 = vmul.f32 %v189, %v189
        %v750 = vmul.f32 %v190, %v190
        %v751 = vmul.f32 %v191, %v191
        %v752 = vmul.f32 %v192, %v192
        %v753 = vmul.f32 %v193, %v193
        %v754 = vmul.f32 %v194, %v194
        %v755 = vmul.f32 %v195, %v195
        %v756 = vmul.f32 %v196, %v196
        %v757 = vmul.f32 %v197, %v197
        %v758 = vmul.f32 %v198, %v198
        %v759 = vmul.f32 %v199, %v199
        %v760 = vmul.f32 %v200, %v200
        %v761 = vmul.f32 %v201, %v201
        %v762 = vmul.f32 %v202, %v202
        %v763 = vmul.f32 %v203, %v203
        %v764 = vmul.f32 %v204, %v204
        %v765 = vmul.f32 %v205, %v205
        %v766 = vmul.f32 %v206, %v206
        %v767 = vmul.f32 %v207, %v207
        %v768 = vmul.f32 %v208, %v208
        %v769 = vmul.f32 %v209, %v209
        %v770 = vmul.f32 %v210, %v210
        %v771 = vmul.f32 %v211, %v211
        %v772 = vmul.f32 %v212, %v212
        %v773 = vmul.f32 %v213, %v213
        %v774 = vmul.f32 %v214, %v214
        %v775 = vmul.f32 %v215, %v215
        %v776 = vmul.f32 %v216, %v216
        %v777 = vmul.f32 %v217, %v217
        %v778 = vsub.f32 0.0, %v746
        %v779 = vsub.f32 0.0, %v747
        %v780 = vsub.f32 0.0, %v748
        %v781 = vsub.f32 0.0, %v749
        %v782 = vsub.f32 0.0, %v750
        %v783 = vsub.f32 0.0, %v751
        %v784 = vsub.f32 0.0, %v752
        %v785 = vsub.f32 0.0, %v753
        %v786 = vsub.f32 0.0, %v754
        %v787 = vsub.f32 0.0, %v755
        %v788 = vsub.f32 0.0, %v756
        %v789 = vsub.f32 0.0, %v757
        %v790 = vsub.f32 0.0, %v758
        %v791 = vsub.f32 0.0, %v759
        %v792 = vsub.f32 0.0, %v760
        %v793 = vsub.f32 0.0, %v761
        %v794 = vsub.f32 0.0, %v762
        %v795 = vsub.f32 0.0, %v763
        %v796 = vsub.f32 0.0, %v764
        %v797 = vsub.f32 0.0, %v765
        %v798 = vsub.f32 0.0, %v766
        %v799 = vsub.f32 0.0, %v767
        %v800 = vsub.f32 0.0, %v768
        %v801 = vsub.f32 0.0, %v769
        %v802 = vsub.f32 0.0, %v770
        %v803 = vsub.f32 0.0, %v771
        %v804 = vsub.f32 0.0, %v772
        %v805 = vsub.f32 0.0, %v773
        %v806 = vsub.f32 0.0, %v774
        %v807 = vsub.f32 0.0, %v775
        %v808 = vsub.f32 0.0, %v776
        %v809 = vsub.f32 0.0, %v777
        %v810 = vpack.c.bf16 %v780, %v778
        %v811 = vpack.c.bf16 %v781, %v779
        %v812 = vpack.c.bf16 %v784, %v782
        %v813 = vpack.c.bf16 %v785, %v783
        %v814 = vpack.c.bf16 %v788, %v786
        %v815 = vpack.c.bf16 %v789, %v787
        %v816 = vpack.c.bf16 %v792, %v790
        %v817 = vpack.c.bf16 %v793, %v791
        %v818 = vpack.c.bf16 %v796, %v794
        %v819 = vpack.c.bf16 %v797, %v795
        %v820 = vpack.c.bf16 %v800, %v798
        %v821 = vpack.c.bf16 %v801, %v799
        %v822 = vpack.c.bf16 %v804, %v802
        %v823 = vpack.c.bf16 %v805, %v803
        %v824 = vpack.c.bf16 %v808, %v806
        %v825 = vpack.c.bf16 %v809, %v807
        %v827 = vmul.bf16 %v810, 1069105081
        %v828 = vpow.bf16.pop %v827
        %v830 = vmul.bf16 %v811, 1069105081
        %v831 = vpow.bf16.pop %v830
        %v833 = vmul.bf16 %v812, 1069105081
        %v834 = vpow.bf16.pop %v833
        %v836 = vmul.bf16 %v813, 1069105081
        %v837 = vpow.bf16.pop %v836
        %v839 = vmul.bf16 %v814, 1069105081
        %v840 = vpow.bf16.pop %v839
        %v842 = vmul.bf16 %v815, 1069105081
        %v843 = vpow.bf16.pop %v842
        %v845 = vmul.bf16 %v816, 1069105081
        %v846 = vpow.bf16.pop %v845
        %v848 = vmul.bf16 %v817, 1069105081
        %v849 = vpow.bf16.pop %v848
        %v851 = vmul.bf16 %v818, 1069105081
        %v852 = vpow.bf16.pop %v851
        %v854 = vmul.bf16 %v819, 1069105081
        %v855 = vpow.bf16.pop %v854
        %v857 = vmul.bf16 %v820, 1069105081
        %v858 = vpow.bf16.pop %v857
        %v860 = vmul.bf16 %v821, 1069105081
        %v861 = vpow.bf16.pop %v860
        %v863 = vmul.bf16 %v822, 1069105081
        %v864 = vpow.bf16.pop %v863
        %v866 = vmul.bf16 %v823, 1069105081
        %v867 = vpow.bf16.pop %v866
        %v869 = vmul.bf16 %v824, 1069105081
        %v870 = vpow.bf16.pop %v869
        %v872 = vmul.bf16 %v825, 1069105081
        %v873 = vpow.bf16.pop %v872
        %v874 = vunpack.c.l.bf16 %v828
        %v875 = vunpack.c.l.bf16 %v831
        %v876 = vunpack.c.h.bf16 %v828
        %v877 = vunpack.c.h.bf16 %v831
        %v878 = vunpack.c.l.bf16 %v834
        %v879 = vunpack.c.l.bf16 %v837
        %v880 = vunpack.c.h.bf16 %v834
        %v881 = vunpack.c.h.bf16 %v837
        %v882 = vunpack.c.l.bf16 %v840
        %v883 = vunpack.c.l.bf16 %v843
        %v884 = vunpack.c.h.bf16 %v840
        %v885 = vunpack.c.h.bf16 %v843
        %v886 = vunpack.c.l.bf16 %v846
        %v887 = vunpack.c.l.bf16 %v849
        %v888 = vunpack.c.h.bf16 %v846
        %v889 = vunpack.c.h.bf16 %v849
        %v890 = vunpack.c.l.bf16 %v852
        %v891 = vunpack.c.l.bf16 %v855
        %v892 = vunpack.c.h.bf16 %v852
        %v893 = vunpack.c.h.bf16 %v855
        %v894 = vunpack.c.l.bf16 %v858
        %v895 = vunpack.c.l.bf16 %v861
        %v896 = vunpack.c.h.bf16 %v858
        %v897 = vunpack.c.h.bf16 %v861
        %v898 = vunpack.c.l.bf16 %v864
        %v899 = vunpack.c.l.bf16 %v867
        %v900 = vunpack.c.h.bf16 %v864
        %v901 = vunpack.c.h.bf16 %v867
        %v902 = vunpack.c.l.bf16 %v870
        %v903 = vunpack.c.l.bf16 %v873
        %v904 = vunpack.c.h.bf16 %v870
        %v905 = vunpack.c.h.bf16 %v873
        %v906 = vadd.f32 %v874, 1.0
        %v907 = vadd.f32 %v875, 1.0
        %v908 = vadd.f32 %v876, 1.0
        %v909 = vadd.f32 %v877, 1.0
        %v910 = vadd.f32 %v878, 1.0
        %v911 = vadd.f32 %v879, 1.0
        %v912 = vadd.f32 %v880, 1.0
        %v913 = vadd.f32 %v881, 1.0
        %v914 = vadd.f32 %v882, 1.0
        %v915 = vadd.f32 %v883, 1.0
        %v916 = vadd.f32 %v884, 1.0
        %v917 = vadd.f32 %v885, 1.0
        %v918 = vadd.f32 %v886, 1.0
        %v919 = vadd.f32 %v887, 1.0
        %v920 = vadd.f32 %v888, 1.0
        %v921 = vadd.f32 %v889, 1.0
        %v922 = vadd.f32 %v890, 1.0
        %v923 = vadd.f32 %v891, 1.0
        %v924 = vadd.f32 %v892, 1.0
        %v925 = vadd.f32 %v893, 1.0
        %v926 = vadd.f32 %v894, 1.0
        %v927 = vadd.f32 %v895, 1.0
        %v928 = vadd.f32 %v896, 1.0
        %v929 = vadd.f32 %v897, 1.0
        %v930 = vadd.f32 %v898, 1.0
        %v931 = vadd.f32 %v899, 1.0
        %v932 = vadd.f32 %v900, 1.0
        %v933 = vadd.f32 %v901, 1.0
        %v934 = vadd.f32 %v902, 1.0
        %v935 = vadd.f32 %v903, 1.0
        %v936 = vadd.f32 %v904, 1.0
        %v937 = vadd.f32 %v905, 1.0
        %v938 = vrcp.pop %v906
        %v939 = vrcp.pop %v907
        %v940 = vrcp.pop %v908
        %v941 = vrcp.pop %v909
        %v942 = vrcp.pop %v910
        %v943 = vrcp.pop %v911
        %v944 = vrcp.pop %v912
        %v945 = vrcp.pop %v913
        %v946 = vrcp.pop %v914
        %v947 = vrcp.pop %v915
        %v948 = vrcp.pop %v916
        %v949 = vrcp.pop %v917
        %v950 = vrcp.pop %v918
        %v951 = vrcp.pop %v919
        %v952 = vrcp.pop %v920
        %v953 = vrcp.pop %v921
        %v954 = vrcp.pop %v922
        %v955 = vrcp.pop %v923
        %v956 = vrcp.pop %v924
        %v957 = vrcp.pop %v925
        %v958 = vrcp.pop %v926
        %v959 = vrcp.pop %v927
        %v960 = vrcp.pop %v928
        %v961 = vrcp.pop %v929
        %v962 = vrcp.pop %v930
        %v963 = vrcp.pop %v931
        %v964 = vrcp.pop %v932
        %v965 = vrcp.pop %v933
        %v966 = vrcp.pop %v934
        %v967 = vrcp.pop %v935
        %v968 = vrcp.pop %v936
        %v969 = vrcp.pop %v937
        %v970 = vadd.f32 %v714, %v938
        %v971 = vadd.f32 %v715, %v939
        %v972 = vadd.f32 %v716, %v940
        %v973 = vadd.f32 %v717, %v941
        %v974 = vadd.f32 %v718, %v942
        %v975 = vadd.f32 %v719, %v943
        %v976 = vadd.f32 %v720, %v944
        %v977 = vadd.f32 %v721, %v945
        %v978 = vadd.f32 %v722, %v946
        %v979 = vadd.f32 %v723, %v947
        %v980 = vadd.f32 %v724, %v948
        %v981 = vadd.f32 %v725, %v949
        %v982 = vadd.f32 %v726, %v950
        %v983 = vadd.f32 %v727, %v951
        %v984 = vadd.f32 %v728, %v952
        %v985 = vadd.f32 %v729, %v953
        %v986 = vadd.f32 %v730, %v954
        %v987 = vadd.f32 %v731, %v955
        %v988 = vadd.f32 %v732, %v956
        %v989 = vadd.f32 %v733, %v957
        %v990 = vadd.f32 %v734, %v958
        %v991 = vadd.f32 %v735, %v959
        %v992 = vadd.f32 %v736, %v960
        %v993 = vadd.f32 %v737, %v961
        %v994 = vadd.f32 %v738, %v962
        %v995 = vadd.f32 %v739, %v963
        %v996 = vadd.f32 %v740, %v964
        %v997 = vadd.f32 %v741, %v965
        %v998 = vadd.f32 %v742, %v966
        %v999 = vadd.f32 %v743, %v967
        %v1000 = vadd.f32 %v744, %v968
        %v1001 = vadd.f32 %v745, %v969
        %v1002 = vmul.f32 %v442, %v970
        %v1003 = vmul.f32 %v443, %v971
        %v1004 = vmul.f32 %v444, %v972
        %v1005 = vmul.f32 %v445, %v973
        %v1006 = vmul.f32 %v446, %v974
        %v1007 = vmul.f32 %v447, %v975
        %v1008 = vmul.f32 %v448, %v976
        %v1009 = vmul.f32 %v449, %v977
        %v1010 = vmul.f32 %v450, %v978
        %v1011 = vmul.f32 %v451, %v979
        %v1012 = vmul.f32 %v452, %v980
        %v1013 = vmul.f32 %v453, %v981
        %v1014 = vmul.f32 %v454, %v982
        %v1015 = vmul.f32 %v455, %v983
        %v1016 = vmul.f32 %v456, %v984
        %v1017 = vmul.f32 %v457, %v985
        %v1018 = vmul.f32 %v458, %v986
        %v1019 = vmul.f32 %v459, %v987
        %v1020 = vmul.f32 %v460, %v988
        %v1021 = vmul.f32 %v461, %v989
        %v1022 = vmul.f32 %v462, %v990
        %v1023 = vmul.f32 %v463, %v991
        %v1024 = vmul.f32 %v464, %v992
        %v1025 = vmul.f32 %v465, %v993
        %v1026 = vmul.f32 %v466, %v994
        %v1027 = vmul.f32 %v467, %v995
        %v1028 = vmul.f32 %v468, %v996
        %v1029 = vmul.f32 %v469, %v997
        %v1030 = vmul.f32 %v470, %v998
        %v1031 = vmul.f32 %v471, %v999
        %v1032 = vmul.f32 %v472, %v1000
        %v1033 = vmul.f32 %v473, %v1001
        %v1034 = vadd.f32 %v1002, %v1004
        %v1035 = vadd.f32 %v1034, %v1006
        %v1036 = vadd.f32 %v1035, %v1008
        %v1037 = vadd.f32 %v1036, %v1010
        %v1038 = vadd.f32 %v1037, %v1012
        %v1039 = vadd.f32 %v1038, %v1014
        %v1040 = vadd.f32 %v1039, %v1016
        %v1041 = vadd.f32 %v1040, %v1018
        %v1042 = vadd.f32 %v1041, %v1020
        %v1043 = vadd.f32 %v1042, %v1022
        %v1044 = vadd.f32 %v1043, %v1024
        %v1045 = vadd.f32 %v1044, %v1026
        %v1046 = vadd.f32 %v1045, %v1028
        %v1047 = vadd.f32 %v1046, %v1030
        %v1048 = vadd.f32 %v1047, %v1032
        %v1049 = vrot.slane %v1048, 4
        %v1050 = vadd.f32 %v1048, %v1049
        %v1051 = vrot.slane %v1050, 2
        %v1052 = vadd.f32 %v1050, %v1051
        %v1053 = vrot.slane %v1052, 1
        %v1054 = vadd.f32 %v1052, %v1053
        %v1055 = vadd.f32 %v1003, %v1005
        %v1056 = vadd.f32 %v1055, %v1007
        %v1057 = vadd.f32 %v1056, %v1009
        %v1058 = vadd.f32 %v1057, %v1011
        %v1059 = vadd.f32 %v1058, %v1013
        %v1060 = vadd.f32 %v1059, %v1015
        %v1061 = vadd.f32 %v1060, %v1017
        %v1062 = vadd.f32 %v1061, %v1019
        %v1063 = vadd.f32 %v1062, %v1021
        %v1064 = vadd.f32 %v1063, %v1023
        %v1065 = vadd.f32 %v1064, %v1025
        %v1066 = vadd.f32 %v1065, %v1027
        %v1067 = vadd.f32 %v1066, %v1029
        %v1068 = vadd.f32 %v1067, %v1031
        %v1069 = vadd.f32 %v1068, %v1033
        %v1070 = vrot.slane %v1069, 4
        %v1071 = vadd.f32 %v1069, %v1070
        %v1072 = vrot.slane %v1071, 2
        %v1073 = vadd.f32 %v1071, %v1072
        %v1074 = vrot.slane %v1073, 1
        %v1075 = vadd.f32 %v1073, %v1074
        %v1076 = vadd.f32 %v1054, %v1075
        %1077 = vadd.xlane.f32.xlu0 %v1076
        %v1078 = vpop.xlane.xlu0 %1077
        %1079 = vst [vmem:[%s178] sm:$0xff] %v1078
        %s1080 = sand.u32 %s79, 1
        %s1081 = scalar_lea.sflag [#allocation4], %s1080
        %s1082 = sand.u32 %s79, 1
        %s1083 = smul.addr %s1082, 8
        %s1084 = scalar_lea.vmem [#allocation5], %s1083
        // Predicated region
        $region33: #{tpu_custom_call.1} parent=27 // pred_check
          %p1085 = pneg %p89
        $region34: #{tpu_custom_call.1} parent=27 // pred_check_branch
          %1087 = sbr.rel (%p1085) target = $region36
        $region35: #{tpu_custom_call.1} parent=27 // pred_region
          %s1089 = ssub.s32 128, 128
          %1090 = vsyncadd %s1081, %s1089
          %s1091 = smul.addr %s19, 128
          %s1092 = scalar_lea.hbm %s2, %s1091
          %s1094 = sshll.u32 %s1084, 4
          %s1095 = int_to_ptr.vmem [resolvable:$true] %s1094
          %1097 = dma.vmem_to_hbm [thread:$0]  %s1095, 128, %s1092, %s1081
        $region36: #{tpu_custom_call.1} parent=27 // pred_fallthru
          _
      $region28: #{tpu_custom_call.1} parent=5 // pred_fallthru
        _
      %p1098 = scmp.le.s32.totalorder 2, %s14
      // Predicated region
      $region37: #{tpu_custom_call.1} parent=5 // pred_check
        %p1099 = pneg %p1098
      $region38: #{tpu_custom_call.1} parent=5 // pred_check_branch
        %1101 = sbr.rel (%p1099) target = $region40
      $region39: #{tpu_custom_call.1} parent=5 // pred_region
        %s1102 = ssub.s32 %s14, 2
        // Predicated region
        $region41: #{tpu_custom_call.1} parent=39 // pred_check
          %p1103 = pneg %p95
        $region42: #{tpu_custom_call.1} parent=39 // pred_check_branch
          %1105 = sbr.rel (%p1103) target = $region44
        $region43: #{tpu_custom_call.1} parent=39 // pred_region
          %s1106 = sand.u32 %s80, 1
          %s1107 = scalar_lea.sflag [#allocation4], %s1106
          %s1108 = sand.u32 %s80, 1
          %s1109 = smul.addr %s1108, 8
          %s1110 = scalar_lea.vmem [#allocation5], %s1109
          %1111 = dma.done %s1107, 128
        $region44: #{tpu_custom_call.1} parent=39 // pred_fallthru
          _
      $region40: #{tpu_custom_call.1} parent=5 // pred_fallthru
        _
    $region6: #{tpu_custom_call.1} parent=1 // loop_footer
      %s18 = sadd.s32 1, %s14
    $region7: #{tpu_custom_call.1} parent=1 // loop_footer_branch
      %13 = sbr.rel target = $region3
    $region8: #{tpu_custom_call.1} parent=1 // loop_exit
      _
    %1112 = vsyncpa [#allocation3], 1
    %s1113 = scalar_lea.sflag [#allocation3], 1
    %1114 = vsyncpa %s1113, 1
    %1115 = vsyncpa [#allocation4], 1
    %s1116 = scalar_lea.sflag [#allocation4], 1
    %1117 = vsyncpa %s1116, 1

</llo_original>
